<compile_context>
chip_gen: v7x
topology: tpu7x:2x2x1
jax: 0.10.0
libtpu: 0.0.40
codegen_flags: <defaults>
</compile_context>

<pallas_src>
import functools

import jax
import jax.numpy as jnp
from jax.experimental import pallas as pl
from jax.experimental.pallas import tpu as pltpu


def _round_up(x, m):
    return ((x + m - 1) // m) * m


def _vmem_capacity_bytes():
    """Physical per-core VMEM (64 MiB on v7x, 128 MiB on v5e/v6e)."""
    try:
        return int(pltpu.get_tpu_info().vmem_capacity_bytes)
    except Exception:
        return 128 << 20


def _pick_tile_rows(rows, h_pad, x_item, out_item, dot_item, n_layers,
                    vmem_cap, requested):
    """Largest row tile fitting the VMEM budget; keep >=2 grid steps if possible."""
    w_bytes = n_layers * h_pad * 2 * h_pad * dot_item       # single-buffered weights
    b_bytes = n_layers * 8 * 2 * h_pad * 4                  # sublane-padded f32 bias
    budget = max(vmem_cap - w_bytes - b_bytes - (8 << 20), 1 << 20)
    # Double-buffered x/out tiles + ~8 f32 words per (row, lane) of unrolled temps.
    per_row = h_pad * (2 * x_item + 2 * out_item + 8 * 4)
    cap = budget // per_row
    cap = min(cap, _round_up(rows, 8))
    if rows >= 16:
        # >= 2 grid steps so ("parallel",) shards across v7x's 2 TensorCores.
        cap = min(cap, _round_up(-(-rows // 2), 8))
    cap = min(cap, requested)
    if cap >= 256:
        tile = (cap // 256) * 256        # MXU M alignment (256-wide on v6e/v7x)
    elif cap >= 128:
        tile = (cap // 128) * 128
    elif cap >= 8:
        tile = (cap // 8) * 8
    else:
        tile = 8
    return int(min(max(tile, 8), 1024))


def _highway_kernel(x_ref, w_ref, b_ref, o_ref, *, n_layers, h_pad, dot_dtype,
                    approx_sigmoid):
    """x_ref: (tile, H_pad); w_ref: (L, H_pad, 2*H_pad); b_ref: (L, 1, 2*H_pad)."""
    x = x_ref[...].astype(jnp.float32)                 # residual carried in f32
    # TODO(synk): if n_layers is large and profiling shows internal-scratch
    # spills, switch to lax.fori_loop(..., unroll=True) to bound live ranges.
    for l in range(n_layers):
        # One fused matmul produces [flow | gate] pre-activations.
        z = jnp.dot(x.astype(dot_dtype), w_ref[l],
                    preferred_element_type=jnp.float32) + b_ref[l]
        flow = jnp.maximum(z[:, :h_pad], 0.0)
        zg = z[:, h_pad:]
        if approx_sigmoid:
            # exp + approx reciprocal both run on the EUP slot (off the VALU).
            gate = pl.reciprocal(1.0 + jnp.exp(-zg), approx=True)
        else:
            gate = jax.nn.sigmoid(zg)
        x = x + gate * (flow - x)                      # == gate*flow + (1-gate)*x
    o_ref[...] = x.astype(o_ref.dtype)


def pack_highway_params(wf, bf, wg, bg, *, compute_dtype=None):
    """Pad to lane-dense H and fuse flow/gate into one (L, H_pad, 2*H_pad) weight.

    Call once for static weights (hoists the packing HBM passes out of the
    per-step path).  wf/wg are (L, H, H) in (in, out) layout: y = x @ W + b.
    Zero lane padding is preserved through every highway layer.
    """
    L, H, _ = wf.shape
    h_pad = _round_up(H, 128)
    dot_dtype = jnp.float32 if compute_dtype is None else jnp.dtype(compute_dtype)

    def pad_w(w):
        return jnp.pad(w.astype(jnp.float32),
                       ((0, 0), (0, h_pad - H), (0, h_pad - H)))

    def pad_b(b):
        return jnp.pad(b.reshape(L, 1, H).astype(jnp.float32),
                       ((0, 0), (0, 0), (0, h_pad - H)))

    w_cat = jnp.concatenate([pad_w(wf), pad_w(wg)], axis=-1).astype(dot_dtype)
    b_cat = jnp.concatenate([pad_b(bf), pad_b(bg)], axis=-1)     # bias stays f32
    return w_cat, b_cat


def highway_forward_packed(inputs, w_cat, b_cat, *, tile_rows=512,
                           approx_sigmoid=False):
    """Highway forward with pre-packed weights.  inputs: (B, S, H)."""
    B, S, H = inputs.shape
    L, h_pad, _ = w_cat.shape
    rows = B * S
    in_dtype = inputs.dtype
    dot_dtype = w_cat.dtype

    x2d = inputs.reshape(rows, H)                      # native dtype, no f32 cast
    pad_lanes = h_pad - H
    if pad_lanes:                                      # only when H % 128 != 0
        x2d = jnp.pad(x2d, ((0, 0), (0, pad_lanes)))
    # Rows are never padded: the grid is ragged (pl.cdiv); OOB rows of the last
    # block read unspecified data that never influences valid rows (the matmul
    # is row-independent) and their writes are dropped by Pallas.

    vmem_cap = _vmem_capacity_bytes()
    tile = _pick_tile_rows(rows, h_pad, x2d.dtype.itemsize,
                           jnp.dtype(in_dtype).itemsize, dot_dtype.itemsize,
                           L, vmem_cap, tile_rows)
    grid = (pl.cdiv(rows, tile),)

    # VMEM budget: single-buffered resident weights/bias + double-buffered
    # x/out tiles + headroom for the unrolled f32 temporaries.
    w_bytes = w_cat.size * dot_dtype.itemsize
    b_bytes = L * 8 * 2 * h_pad * 4
    io_bytes = 2 * tile * h_pad * (x2d.dtype.itemsize + jnp.dtype(in_dtype).itemsize)
    tmp_bytes = 8 * tile * h_pad * 4
    est = w_bytes + b_bytes + io_bytes + tmp_bytes + (4 << 20)
    vmem_limit = int(min(max(est, 32 << 20), vmem_cap))

    kernel = functools.partial(_highway_kernel, n_layers=L, h_pad=h_pad,
                               dot_dtype=dot_dtype, approx_sigmoid=approx_sigmoid)

    def call(single_buffer_weights):
        resident = ({"pipeline_mode": pl.Buffered(1)}
                    if single_buffer_weights else {})
        return pl.pallas_call(
            kernel,
            out_shape=jax.ShapeDtypeStruct((rows, h_pad), in_dtype),
            grid_spec=pltpu.PrefetchScalarGridSpec(
                num_scalar_prefetch=0,
                grid=grid,
                in_specs=[
                    pl.BlockSpec((tile, h_pad), lambda i: (i, 0)),           # x
                    pl.BlockSpec((L, h_pad, 2 * h_pad), lambda i: (0, 0, 0),
                                 **resident),                                # W
                    pl.BlockSpec((L, 1, 2 * h_pad), lambda i: (0, 0, 0),
                                 **resident),                                # b
                ],
                out_specs=pl.BlockSpec((tile, h_pad), lambda i: (i, 0)),
            ),
            compiler_params=pltpu.CompilerParams(
                dimension_semantics=("parallel",),
                vmem_limit_bytes=vmem_limit,
            ),
        )(x2d, w_cat, b_cat)

    try:
        out2d = call(True)
    except Exception:
        out2d = call(False)   # builds without pl.Buffered(1) support

    if pad_lanes:
        out2d = out2d[:, :H]
    return out2d.reshape(B, S, H)


def highway_forward(inputs, wf, bf, wg, bg, *, tile_rows=512, compute_dtype=None,
                    approx_sigmoid=False):
    """Convenience wrapper: pack params then run.  Prefer packing once for
    static weights via pack_highway_params + highway_forward_packed."""
    w_cat, b_cat = pack_highway_params(wf, bf, wg, bg, compute_dtype=compute_dtype)
    return highway_forward_packed(inputs, w_cat, b_cat, tile_rows=tile_rows,
                                  approx_sigmoid=approx_sigmoid)


def highway_reference(inputs, wf, bf, wg, bg):
    x = inputs.astype(jnp.float32)
    for l in range(wf.shape[0]):
        flow = jax.nn.relu(x @ wf[l] + bf[l])
        gate = jax.nn.sigmoid(x @ wg[l] + bg[l])
        x = gate * flow + (1.0 - gate) * x
    return x


def _make_params(key, n_layers, hidden):
    k_x, k_wf, k_bf, k_wg, k_bg = jax.random.split(key, 5)
    scale = 1.0 / jnp.sqrt(hidden)
    wf = jax.random.uniform(k_wf, (n_layers, hidden, hidden),
                            minval=-scale, maxval=scale, dtype=jnp.float32)
    bf = jax.random.uniform(k_bf, (n_layers, hidden),
                            minval=-scale, maxval=scale, dtype=jnp.float32)
    wg = jax.random.uniform(k_wg, (n_layers, hidden, hidden),
                            minval=-scale, maxval=scale, dtype=jnp.float32)
    bg = jax.random.uniform(k_bg, (n_layers, hidden),
                            minval=-scale, maxval=scale, dtype=jnp.float32)
    return k_x, wf, bf, wg, bg


if __name__ == "__main__":
    # Module-implied shapes: inputs [batch, seq_len, hidden].
    batch, seq_len, hidden, n_layers = 2, 8, 32, 2
    k_x, wf, bf, wg, bg = _make_params(jax.random.PRNGKey(0), n_layers, hidden)
    x = jax.random.normal(k_x, (batch, seq_len, hidden), dtype=jnp.float32)

    ref = highway_reference(x, wf, bf, wg, bg)

    # 1) f32 path; weights packed once and reused across calls (hoisted packing).
    w_cat, b_cat = pack_highway_params(wf, bf, wg, bg)
    out = jax.block_until_ready(highway_forward_packed(x, w_cat, b_cat))
    assert out.shape == (batch, seq_len, hidden)
    assert jnp.allclose(out, ref, atol=1e-4, rtol=1e-4), "f32 mismatch vs reference"

    # 2) Small row tile -> multi-step ragged grid hits the same code path.
    out_multi = jax.block_until_ready(
        highway_forward_packed(x, w_cat, b_cat, tile_rows=8))
    assert jnp.allclose(out_multi, ref, atol=1e-4, rtol=1e-4), "multi-tile mismatch"

    # 3) bf16 inputs + bf16 MXU operands (f32 accumulation) - loose tolerance.
    out_bf16 = jax.block_until_ready(
        highway_forward(x.astype(jnp.bfloat16), wf, bf, wg, bg,
                        compute_dtype=jnp.bfloat16))
    assert out_bf16.dtype == jnp.bfloat16
    assert jnp.allclose(out_bf16.astype(jnp.float32), ref,
                        atol=1e-1, rtol=1e-1), "bf16 mismatch"

    # 4) EUP sigmoid variant (exp + approx reciprocal) - modest tolerance.
    out_eup = jax.block_until_ready(
        highway_forward_packed(x, w_cat, b_cat, approx_sigmoid=True))
    assert jnp.allclose(out_eup, ref, atol=5e-2, rtol=5e-2), "approx-sigmoid mismatch"

    # 5) Odd shapes: lane padding (50 -> 128) and a ragged row grid (15 rows).
    b2, s2, h2, l2 = 3, 5, 50, 3
    k_x2, wf2, bf2, wg2, bg2 = _make_params(jax.random.PRNGKey(1), l2, h2)
    x2 = jax.random.normal(k_x2, (b2, s2, h2), dtype=jnp.float32)
    out2 = jax.block_until_ready(highway_forward(x2, wf2, bf2, wg2, bg2))
    ref2 = highway_reference(x2, wf2, bf2, wg2, bg2)
    assert out2.shape == (b2, s2, h2)
    assert jnp.allclose(out2, ref2, atol=1e-4, rtol=1e-4), "padded-shape mismatch"

    print("KERNEL_OK")
</pallas_src>

<mosaic_0001>
module attributes {stable_mosaic.version = 11 : i64} {
  func.func @_highway_kernel(%arg0: i32, %arg1: memref<8x128xf32, #tpu.memory_space<vmem>>, %arg2: memref<2x128x256xf32, #tpu.memory_space<vmem>>, %arg3: memref<2x1x256xf32, #tpu.memory_space<vmem>>, %arg4: memref<8x128xf32, #tpu.memory_space<vmem>>) attributes {dimension_semantics = [#tpu.dimension_semantics<parallel>], iteration_bounds = array<i64: 2>, scalar_prefetch = 0 : i64, scratch_operands = 0 : i64, tpu.core_type = #tpu.core_type<tc>, window_params = [{transform_indices = @transform_0, window_bounds = array<i64: 8, 128>}, {pipeline_mode = #tpu.pipeline_mode<synchronous>, transform_indices = @transform_1, window_bounds = array<i64: 2, 128, 256>}, {pipeline_mode = #tpu.pipeline_mode<synchronous>, transform_indices = @transform_2, window_bounds = array<i64: 2, 1, 256>}, {transform_indices = @transform_3, window_bounds = array<i64: 8, 128>}]} {
    %c0 = arith.constant 0 : index
    %c0_0 = arith.constant 0 : index
    %0 = vector.load %arg1[%c0, %c0_0] : memref<8x128xf32, #tpu.memory_space<vmem>>, vector<8x128xf32>
    %c0_1 = arith.constant 0 : index
    %c0_2 = arith.constant 0 : index
    %c0_3 = arith.constant 0 : index
    %1 = vector.load %arg2[%c0_1, %c0_2, %c0_3] : memref<2x128x256xf32, #tpu.memory_space<vmem>>, vector<1x128x256xf32>
    %2 = vector.shape_cast %1 : vector<1x128x256xf32> to vector<128x256xf32>
    %cst = arith.constant dense<0.000000e+00> : vector<8x256xf32>
    %3 = tpu.matmul %0, %2, %cst {dimension_numbers = #tpu.dot_dimension_numbers<[1], [0], [0], [1], [0, 0, 1, 1], [], []>} : vector<8x128xf32>, vector<128x256xf32>, vector<8x256xf32> -> vector<8x256xf32>
    %c0_4 = arith.constant 0 : index
    %c0_5 = arith.constant 0 : index
    %c0_6 = arith.constant 0 : index
    %4 = vector.load %arg3[%c0_4, %c0_5, %c0_6] : memref<2x1x256xf32, #tpu.memory_space<vmem>>, vector<1x1x256xf32>
    %5 = vector.shape_cast %4 : vector<1x1x256xf32> to vector<1x256xf32>
    %6 = vector.broadcast %5 : vector<1x256xf32> to vector<8x256xf32>
    %7 = arith.addf %3, %6 : vector<8x256xf32>
    %8 = vector.extract_strided_slice %7 {offsets = [0, 0], sizes = [8, 128], strides = [1, 1]} : vector<8x256xf32> to vector<8x128xf32>
    %cst_7 = arith.constant 0.000000e+00 : f32
    %9 = vector.broadcast %cst_7 : f32 to vector<8x128xf32>
    %10 = arith.maximumf %8, %9 : vector<8x128xf32>
    %11 = vector.extract_strided_slice %7 {offsets = [0, 128], sizes = [8, 128], strides = [1, 1]} : vector<8x256xf32> to vector<8x128xf32>
    %12 = arith.negf %11 : vector<8x128xf32>
    %13 = math.exp %12 : vector<8x128xf32>
    %cst_8 = arith.constant 1.000000e+00 : f32
    %14 = vector.broadcast %cst_8 : f32 to vector<8x128xf32>
    %15 = arith.addf %14, %13 : vector<8x128xf32>
    %16 = arith.divf %14, %15 : vector<8x128xf32>
    %17 = arith.subf %10, %0 : vector<8x128xf32>
    %18 = arith.mulf %16, %17 : vector<8x128xf32>
    %19 = arith.addf %0, %18 : vector<8x128xf32>
    %c1 = arith.constant 1 : index
    %c0_9 = arith.constant 0 : index
    %c0_10 = arith.constant 0 : index
    %20 = vector.load %arg2[%c1, %c0_9, %c0_10] : memref<2x128x256xf32, #tpu.memory_space<vmem>>, vector<1x128x256xf32>
    %21 = vector.shape_cast %20 : vector<1x128x256xf32> to vector<128x256xf32>
    %cst_11 = arith.constant dense<0.000000e+00> : vector<8x256xf32>
    %22 = tpu.matmul %19, %21, %cst_11 {dimension_numbers = #tpu.dot_dimension_numbers<[1], [0], [0], [1], [0, 0, 1, 1], [], []>} : vector<8x128xf32>, vector<128x256xf32>, vector<8x256xf32> -> vector<8x256xf32>
    %c1_12 = arith.constant 1 : index
    %c0_13 = arith.constant 0 : index
    %c0_14 = arith.constant 0 : index
    %23 = vector.load %arg3[%c1_12, %c0_13, %c0_14] : memref<2x1x256xf32, #tpu.memory_space<vmem>>, vector<1x1x256xf32>
    %24 = vector.shape_cast %23 : vector<1x1x256xf32> to vector<1x256xf32>
    %25 = vector.broadcast %24 : vector<1x256xf32> to vector<8x256xf32>
    %26 = arith.addf %22, %25 : vector<8x256xf32>
    %27 = vector.extract_strided_slice %26 {offsets = [0, 0], sizes = [8, 128], strides = [1, 1]} : vector<8x256xf32> to vector<8x128xf32>
    %cst_15 = arith.constant 0.000000e+00 : f32
    %28 = vector.broadcast %cst_15 : f32 to vector<8x128xf32>
    %29 = arith.maximumf %27, %28 : vector<8x128xf32>
    %30 = vector.extract_strided_slice %26 {offsets = [0, 128], sizes = [8, 128], strides = [1, 1]} : vector<8x256xf32> to vector<8x128xf32>
    %31 = arith.negf %30 : vector<8x128xf32>
    %32 = math.exp %31 : vector<8x128xf32>
    %cst_16 = arith.constant 1.000000e+00 : f32
    %33 = vector.broadcast %cst_16 : f32 to vector<8x128xf32>
    %34 = arith.addf %33, %32 : vector<8x128xf32>
    %35 = arith.divf %33, %34 : vector<8x128xf32>
    %36 = arith.subf %29, %19 : vector<8x128xf32>
    %37 = arith.mulf %35, %36 : vector<8x128xf32>
    %38 = arith.addf %19, %37 : vector<8x128xf32>
    %c0_17 = arith.constant 0 : index
    %c0_18 = arith.constant 0 : index
    %39 = vector.load %arg4[%c0_17, %c0_18] : memref<8x128xf32, #tpu.memory_space<vmem>>, vector<8x128xf32>
    tpu.vector_store %arg4[%c0_17, %c0_18], %38 {strides = array<i32>} : memref<8x128xf32, #tpu.memory_space<vmem>>, vector<8x128xf32>,
    return
  }
  func.func @transform_0(%arg0: i32) -> (i32, i32) {
    %c0_i32 = arith.constant 0 : i32
    %c0_i32_0 = arith.constant 0 : i32
    return %arg0, %c0_i32 : i32, i32
  }
  func.func @transform_1(%arg0: i32) -> (i32, i32, i32) {
    %c0_i32 = arith.constant 0 : i32
    %c0_i32_0 = arith.constant 0 : i32
    %c0_i32_1 = arith.constant 0 : i32
    %c0_i32_2 = arith.constant 0 : i32
    return %c0_i32, %c0_i32_0, %c0_i32_1 : i32, i32, i32
  }
  func.func @transform_2(%arg0: i32) -> (i32, i32, i32) {
    %c0_i32 = arith.constant 0 : i32
    %c0_i32_0 = arith.constant 0 : i32
    %c0_i32_1 = arith.constant 0 : i32
    %c0_i32_2 = arith.constant 0 : i32
    return %c0_i32, %c0_i32_0, %c0_i32_1 : i32, i32, i32
  }
  func.func @transform_3(%arg0: i32) -> (i32, i32) {
    %c0_i32 = arith.constant 0 : i32
    %c0_i32_0 = arith.constant 0 : i32
    return %arg0, %c0_i32 : i32, i32
  }
}

module attributes {stable_mosaic.version = 11 : i64} {
  func.func @_highway_kernel(%arg0: i32, %arg1: memref<8x128xf32, #tpu.memory_space<vmem>>, %arg2: memref<2x128x256xf32, #tpu.memory_space<vmem>>, %arg3: memref<2x1x256xf32, #tpu.memory_space<vmem>>, %arg4: memref<8x128xf32, #tpu.memory_space<vmem>>) attributes {dimension_semantics = [#tpu.dimension_semantics<parallel>], iteration_bounds = array<i64: 2>, scalar_prefetch = 0 : i64, scratch_operands = 0 : i64, tpu.core_type = #tpu.core_type<tc>, window_params = [{transform_indices = @transform_0, window_bounds = array<i64: 8, 128>}, {pipeline_mode = #tpu.pipeline_mode<synchronous>, transform_indices = @transform_1, window_bounds = array<i64: 2, 128, 256>}, {pipeline_mode = #tpu.pipeline_mode<synchronous>, transform_indices = @transform_2, window_bounds = array<i64: 2, 1, 256>}, {transform_indices = @transform_3, window_bounds = array<i64: 8, 128>}]} {
    %c0 = arith.constant 0 : index
    %c0_0 = arith.constant 0 : index
    %0 = vector.load %arg1[%c0, %c0_0] : memref<8x128xf32, #tpu.memory_space<vmem>>, vector<8x128xf32>
    %c0_1 = arith.constant 0 : index
    %c0_2 = arith.constant 0 : index
    %c0_3 = arith.constant 0 : index
    %1 = vector.load %arg2[%c0_1, %c0_2, %c0_3] : memref<2x128x256xf32, #tpu.memory_space<vmem>>, vector<1x128x256xf32>
    %2 = vector.shape_cast %1 : vector<1x128x256xf32> to vector<128x256xf32>
    %cst = arith.constant dense<0.000000e+00> : vector<8x256xf32>
    %3 = tpu.matmul %0, %2, %cst {dimension_numbers = #tpu.dot_dimension_numbers<[1], [0], [0], [1], [0, 0, 1, 1], [], []>} : vector<8x128xf32>, vector<128x256xf32>, vector<8x256xf32> -> vector<8x256xf32>
    %c0_4 = arith.constant 0 : index
    %c0_5 = arith.constant 0 : index
    %c0_6 = arith.constant 0 : index
    %4 = vector.load %arg3[%c0_4, %c0_5, %c0_6] : memref<2x1x256xf32, #tpu.memory_space<vmem>>, vector<1x1x256xf32>
    %5 = vector.shape_cast %4 : vector<1x1x256xf32> to vector<1x256xf32>
    %6 = vector.broadcast %5 : vector<1x256xf32> to vector<8x256xf32>
    %7 = arith.addf %3, %6 : vector<8x256xf32>
    %8 = vector.extract_strided_slice %7 {offsets = [0, 0], sizes = [8, 128], strides = [1, 1]} : vector<8x256xf32> to vector<8x128xf32>
    %cst_7 = arith.constant 0.000000e+00 : f32
    %9 = vector.broadcast %cst_7 : f32 to vector<8x128xf32>
    %10 = arith.maximumf %8, %9 : vector<8x128xf32>
    %11 = vector.extract_strided_slice %7 {offsets = [0, 128], sizes = [8, 128], strides = [1, 1]} : vector<8x256xf32> to vector<8x128xf32>
    %12 = arith.negf %11 : vector<8x128xf32>
    %13 = math.exp %12 : vector<8x128xf32>
    %cst_8 = arith.constant 1.000000e+00 : f32
    %14 = vector.broadcast %cst_8 : f32 to vector<8x128xf32>
    %15 = arith.addf %14, %13 : vector<8x128xf32>
    %16 = arith.divf %14, %15 : vector<8x128xf32>
    %17 = arith.subf %10, %0 : vector<8x128xf32>
    %18 = arith.mulf %16, %17 : vector<8x128xf32>
    %19 = arith.addf %0, %18 : vector<8x128xf32>
    %c1 = arith.constant 1 : index
    %c0_9 = arith.constant 0 : index
    %c0_10 = arith.constant 0 : index
    %20 = vector.load %arg2[%c1, %c0_9, %c0_10] : memref<2x128x256xf32, #tpu.memory_space<vmem>>, vector<1x128x256xf32>
    %21 = vector.shape_cast %20 : vector<1x128x256xf32> to vector<128x256xf32>
    %cst_11 = arith.constant dense<0.000000e+00> : vector<8x256xf32>
    %22 = tpu.matmul %19, %21, %cst_11 {dimension_numbers = #tpu.dot_dimension_numbers<[1], [0], [0], [1], [0, 0, 1, 1], [], []>} : vector<8x128xf32>, vector<128x256xf32>, vector<8x256xf32> -> vector<8x256xf32>
    %c1_12 = arith.constant 1 : index
    %c0_13 = arith.constant 0 : index
    %c0_14 = arith.constant 0 : index
    %23 = vector.load %arg3[%c1_12, %c0_13, %c0_14] : memref<2x1x256xf32, #tpu.memory_space<vmem>>, vector<1x1x256xf32>
    %24 = vector.shape_cast %23 : vector<1x1x256xf32> to vector<1x256xf32>
    %25 = vector.broadcast %24 : vector<1x256xf32> to vector<8x256xf32>
    %26 = arith.addf %22, %25 : vector<8x256xf32>
    %27 = vector.extract_strided_slice %26 {offsets = [0, 0], sizes = [8, 128], strides = [1, 1]} : vector<8x256xf32> to vector<8x128xf32>
    %cst_15 = arith.constant 0.000000e+00 : f32
    %28 = vector.broadcast %cst_15 : f32 to vector<8x128xf32>
    %29 = arith.maximumf %27, %28 : vector<8x128xf32>
    %30 = vector.extract_strided_slice %26 {offsets = [0, 128], sizes = [8, 128], strides = [1, 1]} : vector<8x256xf32> to vector<8x128xf32>
    %31 = arith.negf %30 : vector<8x128xf32>
    %32 = math.exp %31 : vector<8x128xf32>
    %cst_16 = arith.constant 1.000000e+00 : f32
    %33 = vector.broadcast %cst_16 : f32 to vector<8x128xf32>
    %34 = arith.addf %33, %32 : vector<8x128xf32>
    %35 = arith.divf %33, %34 : vector<8x128xf32>
    %36 = arith.subf %29, %19 : vector<8x128xf32>
    %37 = arith.mulf %35, %36 : vector<8x128xf32>
    %38 = arith.addf %19, %37 : vector<8x128xf32>
    %c0_17 = arith.constant 0 : index
    %c0_18 = arith.constant 0 : index
    %39 = vector.load %arg4[%c0_17, %c0_18] : memref<8x128xf32, #tpu.memory_space<vmem>>, vector<8x128xf32>
    tpu.vector_store %arg4[%c0_17, %c0_18], %38 {strides = array<i32>} : memref<8x128xf32, #tpu.memory_space<vmem>>, vector<8x128xf32>,
    return
  }
  func.func @transform_0(%arg0: i32) -> (i32, i32) {
    %c0_i32 = arith.constant 0 : i32
    %c0_i32_0 = arith.constant 0 : i32
    return %arg0, %c0_i32 : i32, i32
  }
  func.func @transform_1(%arg0: i32) -> (i32, i32, i32) {
    %c0_i32 = arith.constant 0 : i32
    %c0_i32_0 = arith.constant 0 : i32
    %c0_i32_1 = arith.constant 0 : i32
    %c0_i32_2 = arith.constant 0 : i32
    return %c0_i32, %c0_i32_0, %c0_i32_1 : i32, i32, i32
  }
  func.func @transform_2(%arg0: i32) -> (i32, i32, i32) {
    %c0_i32 = arith.constant 0 : i32
    %c0_i32_0 = arith.constant 0 : i32
    %c0_i32_1 = arith.constant 0 : i32
    %c0_i32_2 = arith.constant 0 : i32
    return %c0_i32, %c0_i32_0, %c0_i32_1 : i32, i32, i32
  }
  func.func @transform_3(%arg0: i32) -> (i32, i32) {
    %c0_i32 = arith.constant 0 : i32
    %c0_i32_0 = arith.constant 0 : i32
    return %arg0, %c0_i32 : i32, i32
  }
}

</mosaic_0001>

<llo_original>
// kernel: tpu_custom_call.1
$region0: #{tpu_custom_call.1}
  #allocation0 [shape = 'u32[]', space=smem, size = 0x4, offset = 0x4, fixed_abs, tag = 'smem constant byte address 0x4 - core index']
  #allocation1 [shape = 'u32[144,128]{1,0:T(1,128)}', space=vmem, size = 0x12000, scoped, tag = 'internal scratch']
  %s0 = inlined_call_operand.hbm [shape: f32[16,128], index: 0, kind: input, shape index: {}]
  %s1 = inlined_call_operand.hbm [shape: f32[2,128,256], index: 1, kind: input, shape index: {}]
  %s2 = inlined_call_operand.vmem [shape: f32[2,1,256], index: 2, kind: input, shape index: {}]
  %s3 = inlined_call_operand.hbm [shape: f32[16,128], index: 3, kind: output, shape index: {}]
  %s4 = sld [smem:[#allocation0]]
  $region53: #{tpu_custom_call.1} parent=0
    _
  %s6 = ssub.s32 1, %s4
  %s7 = scalar_select 0, %s6, %s4
  $region1: #{tpu_custom_call.1} parent=0
    #allocation2 [shape = 'u8[8192]{0}', space=vmem, size = 0x2000, scoped, tag = 'input window, operand 0']
    #allocation3 [shape = 's32[2]{0}', space=sflag, size = 0x8, scoped, tag = 'scoped memory for tpu_custom_call.1']
    #allocation4 [shape = 's32[2]{0}', space=sflag, size = 0x8, scoped, tag = 'scoped memory for tpu_custom_call.1']
    #allocation5 [shape = 'u8[262144]{0}', space=vmem, size = 0x40000, scoped, tag = 'input window, operand 1, single buffered']
    #allocation6 [shape = 's32[1]{0}', space=sflag, size = 0x4, scoped, tag = 'scoped memory for tpu_custom_call.1']
    #allocation7 [shape = 'u8[8192]{0}', space=vmem, size = 0x2000, scoped, tag = 'output window, operand 0']
    %8 = vsyncpa [#allocation3], 0
    %s9 = scalar_lea.sflag [#allocation3], 1
    %10 = vsyncpa %s9, 0
    %11 = vsyncpa [#allocation6], 0
    %12 = vsyncpa [#allocation4], 0
    %s13 = scalar_lea.sflag [#allocation4], 1
    %14 = vsyncpa %s13, 0
    loop: start=0, step=1, limit=4
    $region2: #{tpu_custom_call.1} parent=1 // loop_pre_header
      _
    $region3: #{tpu_custom_call.1} parent=1 // loop_header
      %s16 = sphi 0, %s20
      %p17 = scmp.ge.s32.totalorder %s16, 4
      %s26 = sphi 0, %s28
      %s29 = sphi 0, %s26
      %s30 = sphi 0, %s29
      %s46 = sphi 0, %s30
      %s50 = sphi 0, %s50
      %s52 = sphi 0, %s50
      %s53 = sphi 0, %s52
      %s67 = sphi 0, %s53
      %s71 = sphi 0, %s71
      %s73 = sphi 0, %s71
      %s74 = sphi 0, %s73
      %s88 = sphi 0, %s74
      %s94 = sphi 0, %s96
      %s97 = sphi 0, %s94
      %s98 = sphi 0, %s97
      %s114 = sphi 0, %s98
    $region4: #{tpu_custom_call.1} parent=1 // loop_header_branch
      %19 = sbr.rel (%p17) target = $region8
    $region5: #{tpu_custom_call.1} parent=1 // loop_body
      %s21 = ssub.s32 %s16, 1
      %s22 = ssub.s32 %s16, 2
      %s23 = sadd.s32 %s16, 1
      %s24 = ssub.s32 %s16, %s23
      %p25 = scmp.eq.s32.totalorder %s24, 0
      %s27 = sadd.s32 %s26, 1
      %s28 = scalar_select %p25, %s26, %s27
      %p31 = pneg %p25
      %p32 = scmp.eq.s32.totalorder %s16, 1
      %p33 = por %p31, %p32
      %p34 = scmp.ne.s32.totalorder %s26, %s29
      %p35 = scmp.eq.s32.totalorder %s16, 0
      %p36 = por %p34, %p35
      %p37 = scmp.ne.s32.totalorder %s26, %s29
      %p38 = scmp.eq.s32.totalorder %s21, 1
      %p39 = por %p37, %p38
      %p40 = scmp.ne.s32.totalorder %s29, %s30
      %p41 = scmp.eq.s32.totalorder %s21, 0
      %p42 = por %p40, %p41
      %p43 = scmp.ne.s32.totalorder %s29, %s30
      %p44 = scmp.eq.s32.totalorder %s22, 1
      %p45 = por %p43, %p44
      %p47 = scmp.ne.s32.totalorder %s30, %s46
      %p48 = scmp.eq.s32.totalorder %s22, 0
      %p49 = por %p47, %p48
      %s51 = sadd.s32 %s50, 1
      %p54 = scmp.eq.s32.totalorder %s16, 1
      %p55 = scmp.ne.s32.totalorder %s50, %s52
      %p56 = scmp.eq.s32.totalorder %s16, 0
      %p57 = por %p55, %p56
      %p58 = scmp.ne.s32.totalorder %s50, %s52
      %p59 = scmp.eq.s32.totalorder %s21, 1
      %p60 = por %p58, %p59
      %p61 = scmp.ne.s32.totalorder %s52, %s53
      %p62 = scmp.eq.s32.totalorder %s21, 0
      %p63 = por %p61, %p62
      %p64 = scmp.ne.s32.totalorder %s52, %s53
      %p65 = scmp.eq.s32.totalorder %s22, 1
      %p66 = por %p64, %p65
      %p68 = scmp.ne.s32.totalorder %s53, %s67
      %p69 = scmp.eq.s32.totalorder %s22, 0
      %p70 = por %p68, %p69
      %s72 = sadd.s32 %s71, 1
      %p75 = scmp.eq.s32.totalorder %s16, 1
      %p76 = scmp.ne.s32.totalorder %s71, %s73
      %p77 = scmp.eq.s32.totalorder %s16, 0
      %p78 = por %p76, %p77
      %p79 = scmp.ne.s32.totalorder %s71, %s73
      %p80 = scmp.eq.s32.totalorder %s21, 1
      %p81 = por %p79, %p80
      %p82 = scmp.ne.s32.totalorder %s73, %s74
      %p83 = scmp.eq.s32.totalorder %s21, 0
      %p84 = por %p82, %p83
      %p85 = scmp.ne.s32.totalorder %s73, %s74
      %p86 = scmp.eq.s32.totalorder %s22, 1
      %p87 = por %p85, %p86
      %p89 = scmp.ne.s32.totalorder %s74, %s88
      %p90 = scmp.eq.s32.totalorder %s22, 0
      %p91 = por %p89, %p90
      %s92 = ssub.s32 %s16, %s23
      %p93 = scmp.eq.s32.totalorder %s92, 0
      %s95 = sadd.s32 %s94, 1
      %s96 = scalar_select %p93, %s94, %s95
      %p99 = pneg %p93
      %p100 = scmp.eq.s32.totalorder %s16, 1
      %p101 = por %p99, %p100
      %p102 = scmp.ne.s32.totalorder %s94, %s97
      %p103 = scmp.eq.s32.totalorder %s16, 0
      %p104 = por %p102, %p103
      %p105 = scmp.ne.s32.totalorder %s94, %s97
      %p106 = scmp.eq.s32.totalorder %s21, 1
      %p107 = por %p105, %p106
      %p108 = scmp.ne.s32.totalorder %s97, %s98
      %p109 = scmp.eq.s32.totalorder %s21, 0
      %p110 = por %p108, %p109
      %p111 = scmp.ne.s32.totalorder %s97, %s98
      %p112 = scmp.eq.s32.totalorder %s22, 1
      %p113 = por %p111, %p112
      %p115 = scmp.ne.s32.totalorder %s98, %s114
      %p116 = scmp.eq.s32.totalorder %s22, 0
      %p117 = por %p115, %p116
      %p118 = scmp.le.s32.totalorder 1, %s16
      %p119 = scmp.lt.s32.totalorder %s16, 3
      %p120 = pnand %p118, %p119
      %p121 = pneg %p120
      // Predicated region
      $region9: #{tpu_custom_call.1} parent=5 // pred_check
        _
      $region10: #{tpu_custom_call.1} parent=5 // pred_check_branch
        %123 = sbr.rel (%p120) target = $region12
      $region11: #{tpu_custom_call.1} parent=5 // pred_region
        %s124 = ssub.s32 %s16, 1
        // Predicated region
        $region13: #{tpu_custom_call.1} parent=11 // pred_check
          %p125 = pneg %p63
        $region14: #{tpu_custom_call.1} parent=11 // pred_check_branch
          %127 = sbr.rel (%p125) target = $region16
        $region15: #{tpu_custom_call.1} parent=11 // pred_region
          %s129 = ssub.s32 8192, 8192
          %130 = vsyncadd [#allocation6], %s129
          %s131 = sshll.u32 [#allocation5], 4
          %s132 = int_to_ptr.vmem [resolvable:$true] %s131
          %137 = dma.hbm_to_vmem [thread:$0]  %s1, 8192, %s132, [#allocation6], 256, 256, 16
        $region16: #{tpu_custom_call.1} parent=11 // pred_fallthru
          _
        // Predicated region
        $region17: #{tpu_custom_call.1} parent=11 // pred_check
          %p138 = pneg %p84
        $region18: #{tpu_custom_call.1} parent=11 // pred_check_branch
          %140 = sbr.rel (%p138) target = $region20
        $region19: #{tpu_custom_call.1} parent=11 // pred_region
          _
        $region20: #{tpu_custom_call.1} parent=11 // pred_fallthru
          _
      $region12: #{tpu_custom_call.1} parent=5 // pred_fallthru
        _
      %p141 = scmp.lt.s32.totalorder %s16, 2
      // Predicated region
      $region21: #{tpu_custom_call.1} parent=5 // pred_check
        %p142 = pneg %p141
      $region22: #{tpu_custom_call.1} parent=5 // pred_check_branch
        %144 = sbr.rel (%p142) target = $region24
      $region23: #{tpu_custom_call.1} parent=5 // pred_region
        // Predicated region
        $region25: #{tpu_custom_call.1} parent=23 // pred_check
          %p145 = pneg %p36
        $region26: #{tpu_custom_call.1} parent=23 // pred_check_branch
          %147 = sbr.rel (%p145) target = $region28
        $region27: #{tpu_custom_call.1} parent=23 // pred_region
          %s148 = sand.u32 %s26, 1
          %s149 = scalar_lea.sflag [#allocation3], %s148
          %s150 = sand.u32 %s26, 1
          %s151 = smul.addr %s150, 8
          %s152 = scalar_lea.vmem [#allocation2], %s151
          %s154 = ssub.s32 128, 128
          %155 = vsyncadd %s149, %s154
          %s156 = smul.addr %s16, 128
          %s157 = scalar_lea.hbm %s0, %s156
          %s159 = sshll.u32 %s152, 4
          %s160 = int_to_ptr.vmem [resolvable:$true] %s159
          %162 = dma.hbm_to_vmem [thread:$0]  %s157, 128, %s160, %s149
        $region28: #{tpu_custom_call.1} parent=23 // pred_fallthru
          _
      $region24: #{tpu_custom_call.1} parent=5 // pred_fallthru
        _
      %p163 = scmp.le.s32.totalorder 1, %s16
      %p164 = scmp.lt.s32.totalorder %s16, 3
      %p165 = pnand %p163, %p164
      %p166 = pneg %p165
      // Predicated region
      $region29: #{tpu_custom_call.1} parent=5 // pred_check
        _
      $region30: #{tpu_custom_call.1} parent=5 // pred_check_branch
        %168 = sbr.rel (%p165) target = $region32
      $region31: #{tpu_custom_call.1} parent=5 // pred_region
        %s169 = ssub.s32 %s16, 1
        %s170 = sand.u32 %s29, 1
        %s171 = scalar_lea.sflag [#allocation3], %s170
        %s172 = sand.u32 %s29, 1
        %s173 = smul.addr %s172, 8
        %s174 = scalar_lea.vmem [#allocation2], %s173
        // Predicated region
        $region33: #{tpu_custom_call.1} parent=31 // pred_check
          %p175 = pneg %p42
        $region34: #{tpu_custom_call.1} parent=31 // pred_check_branch
          %177 = sbr.rel (%p175) target = $region36
        $region35: #{tpu_custom_call.1} parent=31 // pred_region
          %178 = dma.done %s171, 128
        $region36: #{tpu_custom_call.1} parent=31 // pred_fallthru
          _
        // Predicated region
        $region37: #{tpu_custom_call.1} parent=31 // pred_check
          %p179 = pneg %p63
        $region38: #{tpu_custom_call.1} parent=31 // pred_check_branch
          %181 = sbr.rel (%p179) target = $region40
        $region39: #{tpu_custom_call.1} parent=31 // pred_region
          %182 = dma.done [#allocation6], 8192
        $region40: #{tpu_custom_call.1} parent=31 // pred_fallthru
          _
        %s183 = sand.u32 %s29, 1
        %s184 = scalar_lea.sflag [#allocation3], %s183
        %s185 = sand.u32 %s29, 1
        %s186 = smul.addr %s185, 8
        %s187 = scalar_lea.vmem [#allocation2], %s186
        %p188 = pneg %p42
        %p189 = pneg %p39
        %p190 = pneg %p63
        %p191 = pneg %p60
        %p192 = pneg %p84
        %p193 = pneg %p81
        %p194 = pneg %p110
        %p195 = pneg %p107
        %s196 = sand.u32 %s97, 1
        %s197 = scalar_lea.sflag [#allocation4], %s196
        %s198 = sand.u32 %s97, 1
        %s199 = smul.addr %s198, 8
        %s200 = scalar_lea.vmem [#allocation7], %s199
        %v201 = vld [vmem:[%s174] sm:$0xff]
        %v202 = vld [vmem:[#allocation5] sm:$0xff]
        %v203 = vld [vmem:[#allocation5 + $0x8] sm:$0xff]
        %v204 = vld [vmem:[#allocation5 + $0x10] sm:$0xff]
        %v205 = vld [vmem:[#allocation5 + $0x18] sm:$0xff]
        %v206 = vld [vmem:[#allocation5 + $0x20] sm:$0xff]
        %v207 = vld [vmem:[#allocation5 + $0x28] sm:$0xff]
        %v208 = vld [vmem:[#allocation5 + $0x30] sm:$0xff]
        %v209 = vld [vmem:[#allocation5 + $0x38] sm:$0xff]
        %v210 = vld [vmem:[#allocation5 + $0x40] sm:$0xff]
        %v211 = vld [vmem:[#allocation5 + $0x48] sm:$0xff]
        %v212 = vld [vmem:[#allocation5 + $0x50] sm:$0xff]
        %v213 = vld [vmem:[#allocation5 + $0x58] sm:$0xff]
        %v214 = vld [vmem:[#allocation5 + $0x60] sm:$0xff]
        %v215 = vld [vmem:[#allocation5 + $0x68] sm:$0xff]
        %v216 = vld [vmem:[#allocation5 + $0x70] sm:$0xff]
        %v217 = vld [vmem:[#allocation5 + $0x78] sm:$0xff]
        %v218 = vld [vmem:[#allocation5 + $0x80] sm:$0xff]
        %v219 = vld [vmem:[#allocation5 + $0x88] sm:$0xff]
        %v220 = vld [vmem:[#allocation5 + $0x90] sm:$0xff]
        %v221 = vld [vmem:[#allocation5 + $0x98] sm:$0xff]
        %v222 = vld [vmem:[#allocation5 + $0xa0] sm:$0xff]
        %v223 = vld [vmem:[#allocation5 + $0xa8] sm:$0xff]
        %v224 = vld [vmem:[#allocation5 + $0xb0] sm:$0xff]
        %v225 = vld [vmem:[#allocation5 + $0xb8] sm:$0xff]
        %v226 = vld [vmem:[#allocation5 + $0xc0] sm:$0xff]
        %v227 = vld [vmem:[#allocation5 + $0xc8] sm:$0xff]
        %v228 = vld [vmem:[#allocation5 + $0xd0] sm:$0xff]
        %v229 = vld [vmem:[#allocation5 + $0xd8] sm:$0xff]
        %v230 = vld [vmem:[#allocation5 + $0xe0] sm:$0xff]
        %v231 = vld [vmem:[#allocation5 + $0xe8] sm:$0xff]
        %v232 = vld [vmem:[#allocation5 + $0xf0] sm:$0xff]
        %v233 = vld [vmem:[#allocation5 + $0xf8] sm:$0xff]
        %v234 = vld [vmem:[%s2] sm:$0x3]
        %v236 = vlaneseq
        %v237 = vshrl.u32 %v236, 7
        %v238 = vsub.s32 0, %v237
        %v239 = vrot.slane %v234, %v238
        %v240 = vlaneseq
        %v241 = vshrl.u32 %v240, 7
        %v242 = vsub.s32 1, %v241
        %v243 = vrot.slane %v234, %v242
        %246 = vmatprep.subr.mxu0 %v203
        %247 = vmatpush1.msra.mxu0 %v202
        %248 = vmatprep.subr.mxu0 %v205
        %249 = vmatpush1.msra.mxu0 %v204
        %250 = vmatprep.subr.mxu0 %v207
        %251 = vmatpush1.msra.mxu0 %v206
        %252 = vmatprep.subr.mxu0 %v209
        %253 = vmatpush1.msra.mxu0 %v208
        %254 = vmatprep.subr.mxu0 %v211
        %255 = vmatpush1.msra.mxu0 %v210
        %256 = vmatprep.subr.mxu0 %v213
        %257 = vmatpush1.msra.mxu0 %v212
        %258 = vmatprep.subr.mxu0 %v215
        %259 = vmatpush1.msra.mxu0 %v214
        %260 = vmatprep.subr.mxu0 %v217
        %261 = vmatpush1.msra.mxu0 %v216
        %262 = vmatprep.subr.mxu0 %v219
        %263 = vmatpush1.msra.mxu0 %v218
        %264 = vmatprep.subr.mxu0 %v221
        %265 = vmatpush1.msra.mxu0 %v220
        %266 = vmatprep.subr.mxu0 %v223
        %267 = vmatpush1.msra.mxu0 %v222
        %268 = vmatprep.subr.mxu0 %v225
        %269 = vmatpush1.msra.mxu0 %v224
        %270 = vmatprep.subr.mxu0 %v227
        %271 = vmatpush1.msra.mxu0 %v226
        %272 = vmatprep.subr.mxu0 %v229
        %273 = vmatpush1.msra.mxu0 %v228
        %274 = vmatprep.subr.mxu0 %v231
        %275 = vmatpush1.msra.mxu0 %v230
        %276 = vmatprep.subr.mxu0 %v233
        %277 = vmatpush1.msra.mxu0 %v232
        %278 = vmatprep.subr.mxu0 0.0
        %279 = vmatpush1.msra.mxu0 0.0
        %280 = vmatprep.subr.mxu0 0.0
        %281 = vmatpush1.msra.mxu0 0.0
        %282 = vmatprep.subr.mxu0 0.0
        %283 = vmatpush1.msra.mxu0 0.0
        %284 = vmatprep.subr.mxu0 0.0
        %285 = vmatpush1.msra.mxu0 0.0
        %286 = vmatprep.subr.mxu0 0.0
        %287 = vmatpush1.msra.mxu0 0.0
        %288 = vmatprep.subr.mxu0 0.0
        %289 = vmatpush1.msra.mxu0 0.0
        %290 = vmatprep.subr.mxu0 0.0
        %291 = vmatpush1.msra.mxu0 0.0
        %292 = vmatprep.subr.mxu0 0.0
        %293 = vmatpush1.msra.mxu0 0.0
        %294 = vmatprep.subr.mxu0 0.0
        %295 = vmatpush1.msra.mxu0 0.0
        %296 = vmatprep.subr.mxu0 0.0
        %297 = vmatpush1.msra.mxu0 0.0
        %298 = vmatprep.subr.mxu0 0.0
        %299 = vmatpush1.msra.mxu0 0.0
        %300 = vmatprep.subr.mxu0 0.0
        %301 = vmatpush1.msra.mxu0 0.0
        %302 = vmatprep.subr.mxu0 0.0
        %303 = vmatpush1.msra.mxu0 0.0
        %304 = vmatprep.subr.mxu0 0.0
        %305 = vmatpush1.msra.mxu0 0.0
        %306 = vmatprep.subr.mxu0 0.0
        %307 = vmatpush1.msra.mxu0 0.0
        %308 = vmatprep.subr.mxu0 0.0
        %309 = vmatpush1.msra.mxu0 0.0
        %310 = vmatprep.mubr.f32.mxu0 0.0
        %311 = vmatmul.mubr.f32.gmra.mrb[0].mxu0 %v201
        %v312 = vpop.f32.mrb[0].mxu0
        %v313 = vadd.f32 %v239, %v312
        %v314 = vpop.f32.mrb[0].mxu0
        %v315 = vadd.f32 %v243, %v314
        %316 = vdwg.mxu0
        %v317 = vmax.f32 %v313, 0.0
        %v318 = vxor.u32 %v315, 2147483648
        %v319 = vmul.f32 %v318, 1.442695
        %v320 = vpow.pop %v319
        %v321 = vadd.f32 %v320, 1.0
        %v322 = vrcp.pop %v321
        %v323 = vmul.f32 1.0, %v322
        %v324 = vsub.f32 %v317, %v201
        %v325 = vmul.f32 %v323, %v324
        %v326 = vadd.f32 %v201, %v325
        %s327 = scalar_lea.vmem [#allocation5], 256
        %v328 = vld [vmem:[%s327] sm:$0xff]
        %v329 = vld [vmem:[%s327 + $0x8] sm:$0xff]
        %v330 = vld [vmem:[%s327 + $0x10] sm:$0xff]
        %v331 = vld [vmem:[%s327 + $0x18] sm:$0xff]
        %v332 = vld [vmem:[%s327 + $0x20] sm:$0xff]
        %v333 = vld [vmem:[%s327 + $0x28] sm:$0xff]
        %v334 = vld [vmem:[%s327 + $0x30] sm:$0xff]
        %v335 = vld [vmem:[%s327 + $0x38] sm:$0xff]
        %v336 = vld [vmem:[%s327 + $0x40] sm:$0xff]
        %v337 = vld [vmem:[%s327 + $0x48] sm:$0xff]
        %v338 = vld [vmem:[%s327 + $0x50] sm:$0xff]
        %v339 = vld [vmem:[%s327 + $0x58] sm:$0xff]
        %v340 = vld [vmem:[%s327 + $0x60] sm:$0xff]
        %v341 = vld [vmem:[%s327 + $0x68] sm:$0xff]
        %v342 = vld [vmem:[%s327 + $0x70] sm:$0xff]
        %v343 = vld [vmem:[%s327 + $0x78] sm:$0xff]
        %v344 = vld [vmem:[%s327 + $0x80] sm:$0xff]
        %v345 = vld [vmem:[%s327 + $0x88] sm:$0xff]
        %v346 = vld [vmem:[%s327 + $0x90] sm:$0xff]
        %v347 = vld [vmem:[%s327 + $0x98] sm:$0xff]
        %v348 = vld [vmem:[%s327 + $0xa0] sm:$0xff]
        %v349 = vld [vmem:[%s327 + $0xa8] sm:$0xff]
        %v350 = vld [vmem:[%s327 + $0xb0] sm:$0xff]
        %v351 = vld [vmem:[%s327 + $0xb8] sm:$0xff]
        %v352 = vld [vmem:[%s327 + $0xc0] sm:$0xff]
        %v353 = vld [vmem:[%s327 + $0xc8] sm:$0xff]
        %v354 = vld [vmem:[%s327 + $0xd0] sm:$0xff]
        %v355 = vld [vmem:[%s327 + $0xd8] sm:$0xff]
        %v356 = vld [vmem:[%s327 + $0xe0] sm:$0xff]
        %v357 = vld [vmem:[%s327 + $0xe8] sm:$0xff]
        %v358 = vld [vmem:[%s327 + $0xf0] sm:$0xff]
        %v359 = vld [vmem:[%s327 + $0xf8] sm:$0xff]
        %s360 = scalar_lea.vmem %s2, 2
        %v361 = vld [vmem:[%s360] sm:$0x3]
        %v363 = vlaneseq
        %v364 = vshrl.u32 %v363, 7
        %v365 = vsub.s32 0, %v364
        %v366 = vrot.slane %v361, %v365
        %v367 = vlaneseq
        %v368 = vshrl.u32 %v367, 7
        %v369 = vsub.s32 1, %v368
        %v370 = vrot.slane %v361, %v369
        %373 = vmatprep.subr.mxu0 %v329
        %374 = vmatpush1.msra.mxu0 %v328
        %375 = vmatprep.subr.mxu0 %v331
        %376 = vmatpush1.msra.mxu0 %v330
        %377 = vmatprep.subr.mxu0 %v333
        %378 = vmatpush1.msra.mxu0 %v332
        %379 = vmatprep.subr.mxu0 %v335
        %380 = vmatpush1.msra.mxu0 %v334
        %381 = vmatprep.subr.mxu0 %v337
        %382 = vmatpush1.msra.mxu0 %v336
        %383 = vmatprep.subr.mxu0 %v339
        %384 = vmatpush1.msra.mxu0 %v338
        %385 = vmatprep.subr.mxu0 %v341
        %386 = vmatpush1.msra.mxu0 %v340
        %387 = vmatprep.subr.mxu0 %v343
        %388 = vmatpush1.msra.mxu0 %v342
        %389 = vmatprep.subr.mxu0 %v345
        %390 = vmatpush1.msra.mxu0 %v344
        %391 = vmatprep.subr.mxu0 %v347
        %392 = vmatpush1.msra.mxu0 %v346
        %393 = vmatprep.subr.mxu0 %v349
        %394 = vmatpush1.msra.mxu0 %v348
        %395 = vmatprep.subr.mxu0 %v351
        %396 = vmatpush1.msra.mxu0 %v350
        %397 = vmatprep.subr.mxu0 %v353
        %398 = vmatpush1.msra.mxu0 %v352
        %399 = vmatprep.subr.mxu0 %v355
        %400 = vmatpush1.msra.mxu0 %v354
        %401 = vmatprep.subr.mxu0 %v357
        %402 = vmatpush1.msra.mxu0 %v356
        %403 = vmatprep.subr.mxu0 %v359
        %404 = vmatpush1.msra.mxu0 %v358
        %405 = vmatprep.subr.mxu0 0.0
        %406 = vmatpush1.msra.mxu0 0.0
        %407 = vmatprep.subr.mxu0 0.0
        %408 = vmatpush1.msra.mxu0 0.0
        %409 = vmatprep.subr.mxu0 0.0
        %410 = vmatpush1.msra.mxu0 0.0
        %411 = vmatprep.subr.mxu0 0.0
        %412 = vmatpush1.msra.mxu0 0.0
        %413 = vmatprep.subr.mxu0 0.0
        %414 = vmatpush1.msra.mxu0 0.0
        %415 = vmatprep.subr.mxu0 0.0
        %416 = vmatpush1.msra.mxu0 0.0
        %417 = vmatprep.subr.mxu0 0.0
        %418 = vmatpush1.msra.mxu0 0.0
        %419 = vmatprep.subr.mxu0 0.0
        %420 = vmatpush1.msra.mxu0 0.0
        %421 = vmatprep.subr.mxu0 0.0
        %422 = vmatpush1.msra.mxu0 0.0
        %423 = vmatprep.subr.mxu0 0.0
        %424 = vmatpush1.msra.mxu0 0.0
        %425 = vmatprep.subr.mxu0 0.0
        %426 = vmatpush1.msra.mxu0 0.0
        %427 = vmatprep.subr.mxu0 0.0
        %428 = vmatpush1.msra.mxu0 0.0
        %429 = vmatprep.subr.mxu0 0.0
        %430 = vmatpush1.msra.mxu0 0.0
        %431 = vmatprep.subr.mxu0 0.0
        %432 = vmatpush1.msra.mxu0 0.0
        %433 = vmatprep.subr.mxu0 0.0
        %434 = vmatpush1.msra.mxu0 0.0
        %435 = vmatprep.subr.mxu0 0.0
        %436 = vmatpush1.msra.mxu0 0.0
        %437 = vmatprep.mubr.f32.mxu0 0.0
        %438 = vmatmul.mubr.f32.gmra.mrb[0].mxu0 %v326
        %v439 = vpop.f32.mrb[0].mxu0
        %v440 = vadd.f32 %v366, %v439
        %v441 = vpop.f32.mrb[0].mxu0
        %v442 = vadd.f32 %v370, %v441
        %443 = vdwg.mxu0
        %v444 = vmax.f32 %v440, 0.0
        %v445 = vxor.u32 %v442, 2147483648
        %v446 = vmul.f32 %v445, 1.442695
        %v447 = vpow.pop %v446
        %v448 = vadd.f32 %v447, 1.0
        %v449 = vrcp.pop %v448
        %v450 = vmul.f32 1.0, %v449
        %v451 = vsub.f32 %v444, %v326
        %v452 = vmul.f32 %v450, %v451
        %v453 = vadd.f32 %v326, %v452
        %454 = vst [vmem:[%s200] sm:$0xff] %v453
        %s455 = sand.u32 %s97, 1
        %s456 = scalar_lea.sflag [#allocation4], %s455
        %s457 = sand.u32 %s97, 1
        %s458 = smul.addr %s457, 8
        %s459 = scalar_lea.vmem [#allocation7], %s458
        // Predicated region
        $region41: #{tpu_custom_call.1} parent=31 // pred_check
          %p460 = pneg %p107
        $region42: #{tpu_custom_call.1} parent=31 // pred_check_branch
          %462 = sbr.rel (%p460) target = $region44
        $region43: #{tpu_custom_call.1} parent=31 // pred_region
          %s464 = ssub.s32 128, 128
          %465 = vsyncadd %s456, %s464
          %s466 = smul.addr %s21, 128
          %s467 = scalar_lea.hbm %s3, %s466
          %s469 = sshll.u32 %s459, 4
          %s470 = int_to_ptr.vmem [resolvable:$true] %s469
          %472 = dma.vmem_to_hbm [thread:$0]  %s470, 128, %s467, %s456
        $region44: #{tpu_custom_call.1} parent=31 // pred_fallthru
          _
      $region32: #{tpu_custom_call.1} parent=5 // pred_fallthru
        _
      %p473 = scmp.le.s32.totalorder 2, %s16
      // Predicated region
      $region45: #{tpu_custom_call.1} parent=5 // pred_check
        %p474 = pneg %p473
      $region46: #{tpu_custom_call.1} parent=5 // pred_check_branch
        %476 = sbr.rel (%p474) target = $region48
      $region47: #{tpu_custom_call.1} parent=5 // pred_region
        %s477 = ssub.s32 %s16, 2
        // Predicated region
        $region49: #{tpu_custom_call.1} parent=47 // pred_check
          %p478 = pneg %p113
        $region50: #{tpu_custom_call.1} parent=47 // pred_check_branch
          %480 = sbr.rel (%p478) target = $region52
        $region51: #{tpu_custom_call.1} parent=47 // pred_region
          %s481 = sand.u32 %s98, 1
          %s482 = scalar_lea.sflag [#allocation4], %s481
          %s483 = sand.u32 %s98, 1
          %s484 = smul.addr %s483, 8
          %s485 = scalar_lea.vmem [#allocation7], %s484
          %486 = dma.done %s482, 128
        $region52: #{tpu_custom_call.1} parent=47 // pred_fallthru
          _
      $region48: #{tpu_custom_call.1} parent=5 // pred_fallthru
        _
    $region6: #{tpu_custom_call.1} parent=1 // loop_footer
      %s20 = sadd.s32 1, %s16
    $region7: #{tpu_custom_call.1} parent=1 // loop_footer_branch
      %15 = sbr.rel target = $region3
    $region8: #{tpu_custom_call.1} parent=1 // loop_exit
      _
    %487 = vsyncpa [#allocation3], 1
    %s488 = scalar_lea.sflag [#allocation3], 1
    %489 = vsyncpa %s488, 1
    %490 = vsyncpa [#allocation6], 1
    %491 = vsyncpa [#allocation4], 1
    %s492 = scalar_lea.sflag [#allocation4], 1
    %493 = vsyncpa %s492, 1

// kernel: tpu_custom_call.1
$region0: #{tpu_custom_call.1}
  #allocation0 [shape = 'u32[]', space=smem, size = 0x4, offset = 0x4, fixed_abs, tag = 'smem constant byte address 0x4 - core index']
  #allocation1 [shape = 'u32[144,128]{1,0:T(1,128)}', space=vmem, size = 0x12000, scoped, tag = 'internal scratch']
  %s0 = inlined_call_operand.hbm [shape: f32[16,128], index: 0, kind: input, shape index: {}]
  %s1 = inlined_call_operand.hbm [shape: f32[2,128,256], index: 1, kind: input, shape index: {}]
  %s2 = inlined_call_operand.vmem [shape: f32[2,1,256], index: 2, kind: input, shape index: {}]
  %s3 = inlined_call_operand.hbm [shape: f32[16,128], index: 3, kind: output, shape index: {}]
  %s4 = sld [smem:[#allocation0]]
  $region53: #{tpu_custom_call.1} parent=0
    _
  %s6 = ssub.s32 1, %s4
  %s7 = scalar_select 0, %s6, %s4
  $region1: #{tpu_custom_call.1} parent=0
    #allocation2 [shape = 'u8[8192]{0}', space=vmem, size = 0x2000, scoped, tag = 'input window, operand 0']
    #allocation3 [shape = 's32[2]{0}', space=sflag, size = 0x8, scoped, tag = 'scoped memory for tpu_custom_call.1']
    #allocation4 [shape = 's32[2]{0}', space=sflag, size = 0x8, scoped, tag = 'scoped memory for tpu_custom_call.1']
    #allocation5 [shape = 'u8[262144]{0}', space=vmem, size = 0x40000, scoped, tag = 'input window, operand 1, single buffered']
    #allocation6 [shape = 's32[1]{0}', space=sflag, size = 0x4, scoped, tag = 'scoped memory for tpu_custom_call.1']
    #allocation7 [shape = 'u8[8192]{0}', space=vmem, size = 0x2000, scoped, tag = 'output window, operand 0']
    %8 = vsyncpa [#allocation3], 0
    %s9 = scalar_lea.sflag [#allocation3], 1
    %10 = vsyncpa %s9, 0
    %11 = vsyncpa [#allocation6], 0
    %12 = vsyncpa [#allocation4], 0
    %s13 = scalar_lea.sflag [#allocation4], 1
    %14 = vsyncpa %s13, 0
    loop: start=0, step=1, limit=4
    $region2: #{tpu_custom_call.1} parent=1 // loop_pre_header
      _
    $region3: #{tpu_custom_call.1} parent=1 // loop_header
      %s16 = sphi 0, %s20
      %p17 = scmp.ge.s32.totalorder %s16, 4
      %s26 = sphi 0, %s28
      %s29 = sphi 0, %s26
      %s30 = sphi 0, %s29
      %s46 = sphi 0, %s30
      %s50 = sphi 0, %s50
      %s52 = sphi 0, %s50
      %s53 = sphi 0, %s52
      %s67 = sphi 0, %s53
      %s71 = sphi 0, %s71
      %s73 = sphi 0, %s71
      %s74 = sphi 0, %s73
      %s88 = sphi 0, %s74
      %s94 = sphi 0, %s96
      %s97 = sphi 0, %s94
      %s98 = sphi 0, %s97
      %s114 = sphi 0, %s98
    $region4: #{tpu_custom_call.1} parent=1 // loop_header_branch
      %19 = sbr.rel (%p17) target = $region8
    $region5: #{tpu_custom_call.1} parent=1 // loop_body
      %s21 = ssub.s32 %s16, 1
      %s22 = ssub.s32 %s16, 2
      %s23 = sadd.s32 %s16, 1
      %s24 = ssub.s32 %s16, %s23
      %p25 = scmp.eq.s32.totalorder %s24, 0
      %s27 = sadd.s32 %s26, 1
      %s28 = scalar_select %p25, %s26, %s27
      %p31 = pneg %p25
      %p32 = scmp.eq.s32.totalorder %s16, 1
      %p33 = por %p31, %p32
      %p34 = scmp.ne.s32.totalorder %s26, %s29
      %p35 = scmp.eq.s32.totalorder %s16, 0
      %p36 = por %p34, %p35
      %p37 = scmp.ne.s32.totalorder %s26, %s29
      %p38 = scmp.eq.s32.totalorder %s21, 1
      %p39 = por %p37, %p38
      %p40 = scmp.ne.s32.totalorder %s29, %s30
      %p41 = scmp.eq.s32.totalorder %s21, 0
      %p42 = por %p40, %p41
      %p43 = scmp.ne.s32.totalorder %s29, %s30
      %p44 = scmp.eq.s32.totalorder %s22, 1
      %p45 = por %p43, %p44
      %p47 = scmp.ne.s32.totalorder %s30, %s46
      %p48 = scmp.eq.s32.totalorder %s22, 0
      %p49 = por %p47, %p48
      %s51 = sadd.s32 %s50, 1
      %p54 = scmp.eq.s32.totalorder %s16, 1
      %p55 = scmp.ne.s32.totalorder %s50, %s52
      %p56 = scmp.eq.s32.totalorder %s16, 0
      %p57 = por %p55, %p56
      %p58 = scmp.ne.s32.totalorder %s50, %s52
      %p59 = scmp.eq.s32.totalorder %s21, 1
      %p60 = por %p58, %p59
      %p61 = scmp.ne.s32.totalorder %s52, %s53
      %p62 = scmp.eq.s32.totalorder %s21, 0
      %p63 = por %p61, %p62
      %p64 = scmp.ne.s32.totalorder %s52, %s53
      %p65 = scmp.eq.s32.totalorder %s22, 1
      %p66 = por %p64, %p65
      %p68 = scmp.ne.s32.totalorder %s53, %s67
      %p69 = scmp.eq.s32.totalorder %s22, 0
      %p70 = por %p68, %p69
      %s72 = sadd.s32 %s71, 1
      %p75 = scmp.eq.s32.totalorder %s16, 1
      %p76 = scmp.ne.s32.totalorder %s71, %s73
      %p77 = scmp.eq.s32.totalorder %s16, 0
      %p78 = por %p76, %p77
      %p79 = scmp.ne.s32.totalorder %s71, %s73
      %p80 = scmp.eq.s32.totalorder %s21, 1
      %p81 = por %p79, %p80
      %p82 = scmp.ne.s32.totalorder %s73, %s74
      %p83 = scmp.eq.s32.totalorder %s21, 0
      %p84 = por %p82, %p83
      %p85 = scmp.ne.s32.totalorder %s73, %s74
      %p86 = scmp.eq.s32.totalorder %s22, 1
      %p87 = por %p85, %p86
      %p89 = scmp.ne.s32.totalorder %s74, %s88
      %p90 = scmp.eq.s32.totalorder %s22, 0
      %p91 = por %p89, %p90
      %s92 = ssub.s32 %s16, %s23
      %p93 = scmp.eq.s32.totalorder %s92, 0
      %s95 = sadd.s32 %s94, 1
      %s96 = scalar_select %p93, %s94, %s95
      %p99 = pneg %p93
      %p100 = scmp.eq.s32.totalorder %s16, 1
      %p101 = por %p99, %p100
      %p102 = scmp.ne.s32.totalorder %s94, %s97
      %p103 = scmp.eq.s32.totalorder %s16, 0
      %p104 = por %p102, %p103
      %p105 = scmp.ne.s32.totalorder %s94, %s97
      %p106 = scmp.eq.s32.totalorder %s21, 1
      %p107 = por %p105, %p106
      %p108 = scmp.ne.s32.totalorder %s97, %s98
      %p109 = scmp.eq.s32.totalorder %s21, 0
      %p110 = por %p108, %p109
      %p111 = scmp.ne.s32.totalorder %s97, %s98
      %p112 = scmp.eq.s32.totalorder %s22, 1
      %p113 = por %p111, %p112
      %p115 = scmp.ne.s32.totalorder %s98, %s114
      %p116 = scmp.eq.s32.totalorder %s22, 0
      %p117 = por %p115, %p116
      %p118 = scmp.le.s32.totalorder 1, %s16
      %p119 = scmp.lt.s32.totalorder %s16, 3
      %p120 = pnand %p118, %p119
      %p121 = pneg %p120
      // Predicated region
      $region9: #{tpu_custom_call.1} parent=5 // pred_check
        _
      $region10: #{tpu_custom_call.1} parent=5 // pred_check_branch
        %123 = sbr.rel (%p120) target = $region12
      $region11: #{tpu_custom_call.1} parent=5 // pred_region
        %s124 = ssub.s32 %s16, 1
        // Predicated region
        $region13: #{tpu_custom_call.1} parent=11 // pred_check
          %p125 = pneg %p63
        $region14: #{tpu_custom_call.1} parent=11 // pred_check_branch
          %127 = sbr.rel (%p125) target = $region16
        $region15: #{tpu_custom_call.1} parent=11 // pred_region
          %s129 = ssub.s32 8192, 8192
          %130 = vsyncadd [#allocation6], %s129
          %s131 = sshll.u32 [#allocation5], 4
          %s132 = int_to_ptr.vmem [resolvable:$true] %s131
          %137 = dma.hbm_to_vmem [thread:$0]  %s1, 8192, %s132, [#allocation6], 256, 256, 16
        $region16: #{tpu_custom_call.1} parent=11 // pred_fallthru
          _
        // Predicated region
        $region17: #{tpu_custom_call.1} parent=11 // pred_check
          %p138 = pneg %p84
        $region18: #{tpu_custom_call.1} parent=11 // pred_check_branch
          %140 = sbr.rel (%p138) target = $region20
        $region19: #{tpu_custom_call.1} parent=11 // pred_region
          _
        $region20: #{tpu_custom_call.1} parent=11 // pred_fallthru
          _
      $region12: #{tpu_custom_call.1} parent=5 // pred_fallthru
        _
      %p141 = scmp.lt.s32.totalorder %s16, 2
      // Predicated region
      $region21: #{tpu_custom_call.1} parent=5 // pred_check
        %p142 = pneg %p141
      $region22: #{tpu_custom_call.1} parent=5 // pred_check_branch
        %144 = sbr.rel (%p142) target = $region24
      $region23: #{tpu_custom_call.1} parent=5 // pred_region
        // Predicated region
        $region25: #{tpu_custom_call.1} parent=23 // pred_check
          %p145 = pneg %p36
        $region26: #{tpu_custom_call.1} parent=23 // pred_check_branch
          %147 = sbr.rel (%p145) target = $region28
        $region27: #{tpu_custom_call.1} parent=23 // pred_region
          %s148 = sand.u32 %s26, 1
          %s149 = scalar_lea.sflag [#allocation3], %s148
          %s150 = sand.u32 %s26, 1
          %s151 = smul.addr %s150, 8
          %s152 = scalar_lea.vmem [#allocation2], %s151
          %s154 = ssub.s32 128, 128
          %155 = vsyncadd %s149, %s154
          %s156 = smul.addr %s16, 128
          %s157 = scalar_lea.hbm %s0, %s156
          %s159 = sshll.u32 %s152, 4
          %s160 = int_to_ptr.vmem [resolvable:$true] %s159
          %162 = dma.hbm_to_vmem [thread:$0]  %s157, 128, %s160, %s149
        $region28: #{tpu_custom_call.1} parent=23 // pred_fallthru
          _
      $region24: #{tpu_custom_call.1} parent=5 // pred_fallthru
        _
      %p163 = scmp.le.s32.totalorder 1, %s16
      %p164 = scmp.lt.s32.totalorder %s16, 3
      %p165 = pnand %p163, %p164
      %p166 = pneg %p165
      // Predicated region
      $region29: #{tpu_custom_call.1} parent=5 // pred_check
        _
      $region30: #{tpu_custom_call.1} parent=5 // pred_check_branch
        %168 = sbr.rel (%p165) target = $region32
      $region31: #{tpu_custom_call.1} parent=5 // pred_region
        %s169 = ssub.s32 %s16, 1
        %s170 = sand.u32 %s29, 1
        %s171 = scalar_lea.sflag [#allocation3], %s170
        %s172 = sand.u32 %s29, 1
        %s173 = smul.addr %s172, 8
        %s174 = scalar_lea.vmem [#allocation2], %s173
        // Predicated region
        $region33: #{tpu_custom_call.1} parent=31 // pred_check
          %p175 = pneg %p42
        $region34: #{tpu_custom_call.1} parent=31 // pred_check_branch
          %177 = sbr.rel (%p175) target = $region36
        $region35: #{tpu_custom_call.1} parent=31 // pred_region
          %178 = dma.done %s171, 128
        $region36: #{tpu_custom_call.1} parent=31 // pred_fallthru
          _
        // Predicated region
        $region37: #{tpu_custom_call.1} parent=31 // pred_check
          %p179 = pneg %p63
        $region38: #{tpu_custom_call.1} parent=31 // pred_check_branch
          %181 = sbr.rel (%p179) target = $region40
        $region39: #{tpu_custom_call.1} parent=31 // pred_region
          %182 = dma.done [#allocation6], 8192
        $region40: #{tpu_custom_call.1} parent=31 // pred_fallthru
          _
        %s183 = sand.u32 %s29, 1
        %s184 = scalar_lea.sflag [#allocation3], %s183
        %s185 = sand.u32 %s29, 1
        %s186 = smul.addr %s185, 8
        %s187 = scalar_lea.vmem [#allocation2], %s186
        %p188 = pneg %p42
        %p189 = pneg %p39
        %p190 = pneg %p63
        %p191 = pneg %p60
        %p192 = pneg %p84
        %p193 = pneg %p81
        %p194 = pneg %p110
        %p195 = pneg %p107
        %s196 = sand.u32 %s97, 1
        %s197 = scalar_lea.sflag [#allocation4], %s196
        %s198 = sand.u32 %s97, 1
        %s199 = smul.addr %s198, 8
        %s200 = scalar_lea.vmem [#allocation7], %s199
        %v201 = vld [vmem:[%s174] sm:$0xff]
        %v202 = vld [vmem:[#allocation5] sm:$0xff]
        %v203 = vld [vmem:[#allocation5 + $0x8] sm:$0xff]
        %v204 = vld [vmem:[#allocation5 + $0x10] sm:$0xff]
        %v205 = vld [vmem:[#allocation5 + $0x18] sm:$0xff]
        %v206 = vld [vmem:[#allocation5 + $0x20] sm:$0xff]
        %v207 = vld [vmem:[#allocation5 + $0x28] sm:$0xff]
        %v208 = vld [vmem:[#allocation5 + $0x30] sm:$0xff]
        %v209 = vld [vmem:[#allocation5 + $0x38] sm:$0xff]
        %v210 = vld [vmem:[#allocation5 + $0x40] sm:$0xff]
        %v211 = vld [vmem:[#allocation5 + $0x48] sm:$0xff]
        %v212 = vld [vmem:[#allocation5 + $0x50] sm:$0xff]
        %v213 = vld [vmem:[#allocation5 + $0x58] sm:$0xff]
        %v214 = vld [vmem:[#allocation5 + $0x60] sm:$0xff]
        %v215 = vld [vmem:[#allocation5 + $0x68] sm:$0xff]
        %v216 = vld [vmem:[#allocation5 + $0x70] sm:$0xff]
        %v217 = vld [vmem:[#allocation5 + $0x78] sm:$0xff]
        %v218 = vld [vmem:[#allocation5 + $0x80] sm:$0xff]
        %v219 = vld [vmem:[#allocation5 + $0x88] sm:$0xff]
        %v220 = vld [vmem:[#allocation5 + $0x90] sm:$0xff]
        %v221 = vld [vmem:[#allocation5 + $0x98] sm:$0xff]
        %v222 = vld [vmem:[#allocation5 + $0xa0] sm:$0xff]
        %v223 = vld [vmem:[#allocation5 + $0xa8] sm:$0xff]
        %v224 = vld [vmem:[#allocation5 + $0xb0] sm:$0xff]
        %v225 = vld [vmem:[#allocation5 + $0xb8] sm:$0xff]
        %v226 = vld [vmem:[#allocation5 + $0xc0] sm:$0xff]
        %v227 = vld [vmem:[#allocation5 + $0xc8] sm:$0xff]
        %v228 = vld [vmem:[#allocation5 + $0xd0] sm:$0xff]
        %v229 = vld [vmem:[#allocation5 + $0xd8] sm:$0xff]
        %v230 = vld [vmem:[#allocation5 + $0xe0] sm:$0xff]
        %v231 = vld [vmem:[#allocation5 + $0xe8] sm:$0xff]
        %v232 = vld [vmem:[#allocation5 + $0xf0] sm:$0xff]
        %v233 = vld [vmem:[#allocation5 + $0xf8] sm:$0xff]
        %v234 = vld [vmem:[%s2] sm:$0x3]
        %v236 = vlaneseq
        %v237 = vshrl.u32 %v236, 7
        %v238 = vsub.s32 0, %v237
        %v239 = vrot.slane %v234, %v238
        %v240 = vlaneseq
        %v241 = vshrl.u32 %v240, 7
        %v242 = vsub.s32 1, %v241
        %v243 = vrot.slane %v234, %v242
        %246 = vmatprep.subr.mxu0 %v203
        %247 = vmatpush1.msra.mxu0 %v202
        %248 = vmatprep.subr.mxu0 %v205
        %249 = vmatpush1.msra.mxu0 %v204
        %250 = vmatprep.subr.mxu0 %v207
        %251 = vmatpush1.msra.mxu0 %v206
        %252 = vmatprep.subr.mxu0 %v209
        %253 = vmatpush1.msra.mxu0 %v208
        %254 = vmatprep.subr.mxu0 %v211
        %255 = vmatpush1.msra.mxu0 %v210
        %256 = vmatprep.subr.mxu0 %v213
        %257 = vmatpush1.msra.mxu0 %v212
        %258 = vmatprep.subr.mxu0 %v215
        %259 = vmatpush1.msra.mxu0 %v214
        %260 = vmatprep.subr.mxu0 %v217
        %261 = vmatpush1.msra.mxu0 %v216
        %262 = vmatprep.subr.mxu0 %v219
        %263 = vmatpush1.msra.mxu0 %v218
        %264 = vmatprep.subr.mxu0 %v221
        %265 = vmatpush1.msra.mxu0 %v220
        %266 = vmatprep.subr.mxu0 %v223
        %267 = vmatpush1.msra.mxu0 %v222
        %268 = vmatprep.subr.mxu0 %v225
        %269 = vmatpush1.msra.mxu0 %v224
        %270 = vmatprep.subr.mxu0 %v227
        %271 = vmatpush1.msra.mxu0 %v226
        %272 = vmatprep.subr.mxu0 %v229
        %273 = vmatpush1.msra.mxu0 %v228
        %274 = vmatprep.subr.mxu0 %v231
        %275 = vmatpush1.msra.mxu0 %v230
        %276 = vmatprep.subr.mxu0 %v233
        %277 = vmatpush1.msra.mxu0 %v232
        %278 = vmatprep.subr.mxu0 0.0
        %279 = vmatpush1.msra.mxu0 0.0
        %280 = vmatprep.subr.mxu0 0.0
        %281 = vmatpush1.msra.mxu0 0.0
        %282 = vmatprep.subr.mxu0 0.0
        %283 = vmatpush1.msra.mxu0 0.0
        %284 = vmatprep.subr.mxu0 0.0
        %285 = vmatpush1.msra.mxu0 0.0
        %286 = vmatprep.subr.mxu0 0.0
        %287 = vmatpush1.msra.mxu0 0.0
        %288 = vmatprep.subr.mxu0 0.0
        %289 = vmatpush1.msra.mxu0 0.0
        %290 = vmatprep.subr.mxu0 0.0
        %291 = vmatpush1.msra.mxu0 0.0
        %292 = vmatprep.subr.mxu0 0.0
        %293 = vmatpush1.msra.mxu0 0.0
        %294 = vmatprep.subr.mxu0 0.0
        %295 = vmatpush1.msra.mxu0 0.0
        %296 = vmatprep.subr.mxu0 0.0
        %297 = vmatpush1.msra.mxu0 0.0
        %298 = vmatprep.subr.mxu0 0.0
        %299 = vmatpush1.msra.mxu0 0.0
        %300 = vmatprep.subr.mxu0 0.0
        %301 = vmatpush1.msra.mxu0 0.0
        %302 = vmatprep.subr.mxu0 0.0
        %303 = vmatpush1.msra.mxu0 0.0
        %304 = vmatprep.subr.mxu0 0.0
        %305 = vmatpush1.msra.mxu0 0.0
        %306 = vmatprep.subr.mxu0 0.0
        %307 = vmatpush1.msra.mxu0 0.0
        %308 = vmatprep.subr.mxu0 0.0
        %309 = vmatpush1.msra.mxu0 0.0
        %310 = vmatprep.mubr.f32.mxu0 0.0
        %311 = vmatmul.mubr.f32.gmra.mrb[0].mxu0 %v201
        %v312 = vpop.f32.mrb[0].mxu0
        %v313 = vadd.f32 %v239, %v312
        %v314 = vpop.f32.mrb[0].mxu0
        %v315 = vadd.f32 %v243, %v314
        %316 = vdwg.mxu0
        %v317 = vmax.f32 %v313, 0.0
        %v318 = vxor.u32 %v315, 2147483648
        %v319 = vmul.f32 %v318, 1.442695
        %v320 = vpow.pop %v319
        %v321 = vadd.f32 %v320, 1.0
        %v322 = vrcp.pop %v321
        %v323 = vmul.f32 1.0, %v322
        %v324 = vsub.f32 %v317, %v201
        %v325 = vmul.f32 %v323, %v324
        %v326 = vadd.f32 %v201, %v325
        %s327 = scalar_lea.vmem [#allocation5], 256
        %v328 = vld [vmem:[%s327] sm:$0xff]
        %v329 = vld [vmem:[%s327 + $0x8] sm:$0xff]
        %v330 = vld [vmem:[%s327 + $0x10] sm:$0xff]
        %v331 = vld [vmem:[%s327 + $0x18] sm:$0xff]
        %v332 = vld [vmem:[%s327 + $0x20] sm:$0xff]
        %v333 = vld [vmem:[%s327 + $0x28] sm:$0xff]
        %v334 = vld [vmem:[%s327 + $0x30] sm:$0xff]
        %v335 = vld [vmem:[%s327 + $0x38] sm:$0xff]
        %v336 = vld [vmem:[%s327 + $0x40] sm:$0xff]
        %v337 = vld [vmem:[%s327 + $0x48] sm:$0xff]
        %v338 = vld [vmem:[%s327 + $0x50] sm:$0xff]
        %v339 = vld [vmem:[%s327 + $0x58] sm:$0xff]
        %v340 = vld [vmem:[%s327 + $0x60] sm:$0xff]
        %v341 = vld [vmem:[%s327 + $0x68] sm:$0xff]
        %v342 = vld [vmem:[%s327 + $0x70] sm:$0xff]
        %v343 = vld [vmem:[%s327 + $0x78] sm:$0xff]
        %v344 = vld [vmem:[%s327 + $0x80] sm:$0xff]
        %v345 = vld [vmem:[%s327 + $0x88] sm:$0xff]
        %v346 = vld [vmem:[%s327 + $0x90] sm:$0xff]
        %v347 = vld [vmem:[%s327 + $0x98] sm:$0xff]
        %v348 = vld [vmem:[%s327 + $0xa0] sm:$0xff]
        %v349 = vld [vmem:[%s327 + $0xa8] sm:$0xff]
        %v350 = vld [vmem:[%s327 + $0xb0] sm:$0xff]
        %v351 = vld [vmem:[%s327 + $0xb8] sm:$0xff]
        %v352 = vld [vmem:[%s327 + $0xc0] sm:$0xff]
        %v353 = vld [vmem:[%s327 + $0xc8] sm:$0xff]
        %v354 = vld [vmem:[%s327 + $0xd0] sm:$0xff]
        %v355 = vld [vmem:[%s327 + $0xd8] sm:$0xff]
        %v356 = vld [vmem:[%s327 + $0xe0] sm:$0xff]
        %v357 = vld [vmem:[%s327 + $0xe8] sm:$0xff]
        %v358 = vld [vmem:[%s327 + $0xf0] sm:$0xff]
        %v359 = vld [vmem:[%s327 + $0xf8] sm:$0xff]
        %s360 = scalar_lea.vmem %s2, 2
        %v361 = vld [vmem:[%s360] sm:$0x3]
        %v363 = vlaneseq
        %v364 = vshrl.u32 %v363, 7
        %v365 = vsub.s32 0, %v364
        %v366 = vrot.slane %v361, %v365
        %v367 = vlaneseq
        %v368 = vshrl.u32 %v367, 7
        %v369 = vsub.s32 1, %v368
        %v370 = vrot.slane %v361, %v369
        %373 = vmatprep.subr.mxu0 %v329
        %374 = vmatpush1.msra.mxu0 %v328
        %375 = vmatprep.subr.mxu0 %v331
        %376 = vmatpush1.msra.mxu0 %v330
        %377 = vmatprep.subr.mxu0 %v333
        %378 = vmatpush1.msra.mxu0 %v332
        %379 = vmatprep.subr.mxu0 %v335
        %380 = vmatpush1.msra.mxu0 %v334
        %381 = vmatprep.subr.mxu0 %v337
        %382 = vmatpush1.msra.mxu0 %v336
        %383 = vmatprep.subr.mxu0 %v339
        %384 = vmatpush1.msra.mxu0 %v338
        %385 = vmatprep.subr.mxu0 %v341
        %386 = vmatpush1.msra.mxu0 %v340
        %387 = vmatprep.subr.mxu0 %v343
        %388 = vmatpush1.msra.mxu0 %v342
        %389 = vmatprep.subr.mxu0 %v345
        %390 = vmatpush1.msra.mxu0 %v344
        %391 = vmatprep.subr.mxu0 %v347
        %392 = vmatpush1.msra.mxu0 %v346
        %393 = vmatprep.subr.mxu0 %v349
        %394 = vmatpush1.msra.mxu0 %v348
        %395 = vmatprep.subr.mxu0 %v351
        %396 = vmatpush1.msra.mxu0 %v350
        %397 = vmatprep.subr.mxu0 %v353
        %398 = vmatpush1.msra.mxu0 %v352
        %399 = vmatprep.subr.mxu0 %v355
        %400 = vmatpush1.msra.mxu0 %v354
        %401 = vmatprep.subr.mxu0 %v357
        %402 = vmatpush1.msra.mxu0 %v356
        %403 = vmatprep.subr.mxu0 %v359
        %404 = vmatpush1.msra.mxu0 %v358
        %405 = vmatprep.subr.mxu0 0.0
        %406 = vmatpush1.msra.mxu0 0.0
        %407 = vmatprep.subr.mxu0 0.0
        %408 = vmatpush1.msra.mxu0 0.0
        %409 = vmatprep.subr.mxu0 0.0
        %410 = vmatpush1.msra.mxu0 0.0
        %411 = vmatprep.subr.mxu0 0.0
        %412 = vmatpush1.msra.mxu0 0.0
        %413 = vmatprep.subr.mxu0 0.0
        %414 = vmatpush1.msra.mxu0 0.0
        %415 = vmatprep.subr.mxu0 0.0
        %416 = vmatpush1.msra.mxu0 0.0
        %417 = vmatprep.subr.mxu0 0.0
        %418 = vmatpush1.msra.mxu0 0.0
        %419 = vmatprep.subr.mxu0 0.0
        %420 = vmatpush1.msra.mxu0 0.0
        %421 = vmatprep.subr.mxu0 0.0
        %422 = vmatpush1.msra.mxu0 0.0
        %423 = vmatprep.subr.mxu0 0.0
        %424 = vmatpush1.msra.mxu0 0.0
        %425 = vmatprep.subr.mxu0 0.0
        %426 = vmatpush1.msra.mxu0 0.0
        %427 = vmatprep.subr.mxu0 0.0
        %428 = vmatpush1.msra.mxu0 0.0
        %429 = vmatprep.subr.mxu0 0.0
        %430 = vmatpush1.msra.mxu0 0.0
        %431 = vmatprep.subr.mxu0 0.0
        %432 = vmatpush1.msra.mxu0 0.0
        %433 = vmatprep.subr.mxu0 0.0
        %434 = vmatpush1.msra.mxu0 0.0
        %435 = vmatprep.subr.mxu0 0.0
        %436 = vmatpush1.msra.mxu0 0.0
        %437 = vmatprep.mubr.f32.mxu0 0.0
        %438 = vmatmul.mubr.f32.gmra.mrb[0].mxu0 %v326
        %v439 = vpop.f32.mrb[0].mxu0
        %v440 = vadd.f32 %v366, %v439
        %v441 = vpop.f32.mrb[0].mxu0
        %v442 = vadd.f32 %v370, %v441
        %443 = vdwg.mxu0
        %v444 = vmax.f32 %v440, 0.0
        %v445 = vxor.u32 %v442, 2147483648
        %v446 = vmul.f32 %v445, 1.442695
        %v447 = vpow.pop %v446
        %v448 = vadd.f32 %v447, 1.0
        %v449 = vrcp.pop %v448
        %v450 = vmul.f32 1.0, %v449
        %v451 = vsub.f32 %v444, %v326
        %v452 = vmul.f32 %v450, %v451
        %v453 = vadd.f32 %v326, %v452
        %454 = vst [vmem:[%s200] sm:$0xff] %v453
        %s455 = sand.u32 %s97, 1
        %s456 = scalar_lea.sflag [#allocation4], %s455
        %s457 = sand.u32 %s97, 1
        %s458 = smul.addr %s457, 8
        %s459 = scalar_lea.vmem [#allocation7], %s458
        // Predicated region
        $region41: #{tpu_custom_call.1} parent=31 // pred_check
          %p460 = pneg %p107
        $region42: #{tpu_custom_call.1} parent=31 // pred_check_branch
          %462 = sbr.rel (%p460) target = $region44
        $region43: #{tpu_custom_call.1} parent=31 // pred_region
          %s464 = ssub.s32 128, 128
          %465 = vsyncadd %s456, %s464
          %s466 = smul.addr %s21, 128
          %s467 = scalar_lea.hbm %s3, %s466
          %s469 = sshll.u32 %s459, 4
          %s470 = int_to_ptr.vmem [resolvable:$true] %s469
          %472 = dma.vmem_to_hbm [thread:$0]  %s470, 128, %s467, %s456
        $region44: #{tpu_custom_call.1} parent=31 // pred_fallthru
          _
      $region32: #{tpu_custom_call.1} parent=5 // pred_fallthru
        _
      %p473 = scmp.le.s32.totalorder 2, %s16
      // Predicated region
      $region45: #{tpu_custom_call.1} parent=5 // pred_check
        %p474 = pneg %p473
      $region46: #{tpu_custom_call.1} parent=5 // pred_check_branch
        %476 = sbr.rel (%p474) target = $region48
      $region47: #{tpu_custom_call.1} parent=5 // pred_region
        %s477 = ssub.s32 %s16, 2
        // Predicated region
        $region49: #{tpu_custom_call.1} parent=47 // pred_check
          %p478 = pneg %p113
        $region50: #{tpu_custom_call.1} parent=47 // pred_check_branch
          %480 = sbr.rel (%p478) target = $region52
        $region51: #{tpu_custom_call.1} parent=47 // pred_region
          %s481 = sand.u32 %s98, 1
          %s482 = scalar_lea.sflag [#allocation4], %s481
          %s483 = sand.u32 %s98, 1
          %s484 = smul.addr %s483, 8
          %s485 = scalar_lea.vmem [#allocation7], %s484
          %486 = dma.done %s482, 128
        $region52: #{tpu_custom_call.1} parent=47 // pred_fallthru
          _
      $region48: #{tpu_custom_call.1} parent=5 // pred_fallthru
        _
    $region6: #{tpu_custom_call.1} parent=1 // loop_footer
      %s20 = sadd.s32 1, %s16
    $region7: #{tpu_custom_call.1} parent=1 // loop_footer_branch
      %15 = sbr.rel target = $region3
    $region8: #{tpu_custom_call.1} parent=1 // loop_exit
      _
    %487 = vsyncpa [#allocation3], 1
    %s488 = scalar_lea.sflag [#allocation3], 1
    %489 = vsyncpa %s488, 1
    %490 = vsyncpa [#allocation6], 1
    %491 = vsyncpa [#allocation4], 1
    %s492 = scalar_lea.sflag [#allocation4], 1
    %493 = vsyncpa %s492, 1

</llo_original>
